<compile_context>
chip_gen: v5e
topology: v5e:2x2
jax: 0.10.0
libtpu: 0.0.40
codegen_flags: <defaults>
</compile_context>

<pallas_src>
import math
from functools import partial

import jax
import jax.numpy as jnp
from jax.experimental import pallas as pl
from jax.experimental.pallas import tpu as pltpu

_LANES = 128        # lane width of a vreg; lane-dense last dim for the 2D view
_SUBLANES = 8       # sublane granularity — keep chunk boundaries tile-aligned
_MIN_CHUNK_ROWS = 8 # do not split into chunks smaller than one (8,128) tile


def _make_dma_copy_kernel(chunk_rows: int):
    """HBM -> HBM identity copy of one contiguous row chunk per grid step."""

    def kernel(x_ref, o_ref, sem):
        i = pl.program_id(0)
        start = pl.multiple_of(i * chunk_rows, chunk_rows)
        cp = pltpu.make_async_copy(
            x_ref.at[pl.ds(start, chunk_rows)],
            o_ref.at[pl.ds(start, chunk_rows)],
            sem,
        )
        cp.start()
        cp.wait()

    return kernel


def _pick_num_chunks(rows: int) -> int:
    """>=2 chunks when possible (v7x has 2 TensorCores), tile-aligned rows."""
    for c in (8, 4, 2):
        chunk = rows // c
        if rows % c == 0 and chunk % _SUBLANES == 0 and chunk >= _MIN_CHUNK_ROWS:
            return c
    return 1


@jax.jit
def mynet_forward(x: jax.Array) -> jax.Array:
    """Pallas implementation of MyNet.forward (identity pass-through).

    x: arbitrary-shaped array (NCHW in the PyTorch convention).
    returns: array of identical shape/dtype/values.
    """
    orig_shape = x.shape
    total = math.prod(orig_shape)
    if total == 0:
        return x

    # Lane-dense 2D view when the size divides 128 (free bitcast under jit);
    # otherwise a flat 1-D view copied in a single whole-array DMA — no
    # padding and no post-slice in either case.
    if total % _LANES == 0:
        rows = total // _LANES
        view = x.reshape(rows, _LANES)
        num_chunks = _pick_num_chunks(rows)
    else:
        rows = total
        view = x.reshape(total)
        num_chunks = 1

    chunk_rows = rows // num_chunks

    out = pl.pallas_call(
        _make_dma_copy_kernel(chunk_rows),
        out_shape=jax.ShapeDtypeStruct(view.shape, view.dtype),
        grid_spec=pltpu.PrefetchScalarGridSpec(
            num_scalar_prefetch=0,
            grid=(num_chunks,),
            in_specs=[pl.BlockSpec(memory_space=pl.ANY)],   # raw HBM ref
            out_specs=pl.BlockSpec(memory_space=pl.ANY),    # raw HBM ref
            scratch_shapes=[pltpu.SemaphoreType.DMA(())],
        ),
        compiler_params=pltpu.CompilerParams(
            dimension_semantics=("parallel",),  # shard chunks across TCs (v7x)
        ),
    )(view)

    return out.reshape(orig_shape)


class MyNetPallas:
    """Mirror of the (empty) PyTorch MyNet: no parameters are defined."""

    def __init__(self, output_dim: int):
        # The reference __init__ creates no layers/weights.
        self.output_dim = output_dim

    def forward(self, x: jax.Array) -> jax.Array:
        return mynet_forward(x)

    def predict(self, x: jax.Array) -> jax.Array:
        # TODO(synk): predict() also raises NotImplementedError in the source;
        #             mapped to the same pass-through forward.
        return self.forward(x)


if __name__ == "__main__":
    key = jax.random.PRNGKey(0)
    # Small NCHW input consistent with a conv-style network.
    x = jax.random.normal(key, (2, 4, 16, 16), dtype=jnp.float32)

    net = MyNetPallas(output_dim=10)
    y = net.forward(x)
    y = jax.block_until_ready(y)

    assert y.shape == x.shape and y.dtype == x.dtype
    assert bool(jnp.allclose(y, x)), "identity forward mismatch"
    print("KERNEL_OK")
</pallas_src>

<mosaic_0001>
module attributes {stable_mosaic.version = 11 : i64} {
  func.func @kernel(%arg0: i32, %arg1: memref<16x128xf32, #tpu.memory_space<any>>, %arg2: memref<16x128xf32, #tpu.memory_space<any>>, %arg3: memref<!tpu.dma_semaphore, #tpu.memory_space<semaphore_mem>>) attributes {dimension_semantics = [#tpu.dimension_semantics<parallel>], iteration_bounds = array<i64: 2>, scalar_prefetch = 0 : i64, scratch_operands = 1 : i64, tpu.core_type = #tpu.core_type<tc>, window_params = [{}, {}]} {
    %c8_i32 = arith.constant 8 : i32
    %0 = arith.muli %arg0, %c8_i32 : i32
    %1 = tpu.assume_multiple %0, 8 : i32
    %c0_i32 = arith.constant 0 : i32
    %2 = tpu.memref_slice %arg1[%1, %c0_i32] : memref<16x128xf32, #tpu.memory_space<any>> -> memref<8x128xf32, #tpu.memory_space<any>>
    %c0_i32_0 = arith.constant 0 : i32
    %3 = tpu.memref_slice %arg2[%1, %c0_i32_0] : memref<16x128xf32, #tpu.memory_space<any>> -> memref<8x128xf32, #tpu.memory_space<any>>
    tpu.enqueue_dma source(%2 : memref<8x128xf32, #tpu.memory_space<any>>) target(%3 : memref<8x128xf32, #tpu.memory_space<any>>) target_semaphore(%arg3 : memref<!tpu.dma_semaphore, #tpu.memory_space<semaphore_mem>>)
    %c0_i32_1 = arith.constant 0 : i32
    %4 = tpu.memref_slice %arg1[%1, %c0_i32_1] : memref<16x128xf32, #tpu.memory_space<any>> -> memref<8x128xf32, #tpu.memory_space<any>>
    %c0_i32_2 = arith.constant 0 : i32
    %5 = tpu.memref_slice %arg2[%1, %c0_i32_2] : memref<16x128xf32, #tpu.memory_space<any>> -> memref<8x128xf32, #tpu.memory_space<any>>
    tpu.wait_dma2 semaphore(%arg3 : memref<!tpu.dma_semaphore, #tpu.memory_space<semaphore_mem>>) src(%4 : memref<8x128xf32, #tpu.memory_space<any>>) dst(%5 : memref<8x128xf32, #tpu.memory_space<any>>)
    return
  }
}

</mosaic_0001>

<llo_original>
// kernel: mynet_forward.1
$region0: #{mynet_forward.1}
  #allocation0 [shape = 'u32[]', space=smem, size = 0x4, offset = 0x4, fixed_abs, tag = 'smem constant byte address 0x4 - core index']
  #allocation1 [shape = 'u32[72,128]{1,0:T(1,128)}', space=vmem, size = 0x9000, scoped, tag = 'internal scratch']
  #allocation2 [shape = 's32[1]{0}', space=sflag, size = 0x4, scoped, tag = 'scratch operand']
  #allocation3 [shape = 's32[]', space=sflag, size = 0x4, offset = 0, fixed_abs, tag = 'sflag constant byte address 0x0 - dummy sync flag']
  %s0 = inlined_call_operand.vmem [shape: f32[16,128], index: 0, kind: input, shape index: {}]
  %s1 = inlined_call_operand.vmem [shape: f32[16,128], index: 1, kind: output, shape index: {}]
  %s2 = sld [smem:[#allocation0]]
  $region43: #{mynet_forward.1} parent=0
    _
  %s4 = ssub.s32 1, %s2
  %s5 = scalar_select 0, %s4, %s2
  loop: start=0, step=1, limit=2
  $region2: #{mynet_forward.1} parent=0 // loop_pre_header
    _
  $region3: #{mynet_forward.1} parent=0 // loop_header
    %s7 = sphi 0, %s11
    %p8 = scmp.ge.s32.totalorder %s7, 2
  $region4: #{mynet_forward.1} parent=0 // loop_header_branch
    %10 = sbr.rel (%p8) target = $region8
  $region5: #{mynet_forward.1} parent=0 // loop_body
    %s12 = sadd.s32 %s7, 1
    %s13 = smul.u32 %s7, 8
    %s14 = scalar_lea.vmem %s0, %s13
    %s15 = scalar_lea.vmem %s1, %s13
    // Predicated region
    $region9: #{mynet_forward.1} parent=5 // pred_check
      _
    $region10: #{mynet_forward.1} parent=5 // pred_check_branch
      %17 = sbr.rel (0) target = $region12
    $region11: #{mynet_forward.1} parent=5 // pred_region
      // Predicated region
      $region24: #{mynet_forward.1} parent=11 // pred_check
        _
      $region25: #{mynet_forward.1} parent=11 // pred_check_branch
        %33 = sbr.rel (0) target = $region27
      $region26: #{mynet_forward.1} parent=11 // pred_region
        loop: start=0, step=1, limit=1
        $region28: #{mynet_forward.1} parent=26 // loop_pre_header
          _
        $region29: #{mynet_forward.1} parent=26 // loop_header
          %s35 = sphi 0, %s39
          %p36 = scmp.ge.s32.totalorder %s35, 1
          %s40 = sphi %s14, %s14
          %s41 = sphi %s15, %s15
        $region30: #{mynet_forward.1} parent=26 // loop_header_branch
          %38 = sbr.rel (%p36) target = $region34
        $region31: #{mynet_forward.1} parent=26 // loop_body
          %v42 = vld [vmem:[%s40] sm:$0xff]
          %43 = vst [vmem:[%s41] sm:$0xff] %v42
        $region32: #{mynet_forward.1} parent=26 // loop_footer
          %s39 = sadd.s32 1, %s35
        $region33: #{mynet_forward.1} parent=26 // loop_footer_branch
          %34 = sbr.rel target = $region29
        $region34: #{mynet_forward.1} parent=26 // loop_exit
          _
      $region27: #{mynet_forward.1} parent=11 // pred_fallthru
        _
      // Predicated region
      $region35: #{mynet_forward.1} parent=11 // pred_check
        _
      $region36: #{mynet_forward.1} parent=11 // pred_check_branch
        %45 = sbr.rel target = $region38
      $region37: #{mynet_forward.1} parent=11 // pred_region
        _
      $region38: #{mynet_forward.1} parent=11 // pred_fallthru
        _
    $region12: #{mynet_forward.1} parent=5 // pred_fallthru
      _
    // Predicated region
    $region13: #{mynet_forward.1} parent=5 // pred_check
      _
    $region14: #{mynet_forward.1} parent=5 // pred_check_branch
      %19 = sbr.rel target = $region16
    $region15: #{mynet_forward.1} parent=5 // pred_region
      %s21 = ssub.s32 256, 1
      loop: start=0, step=1, limit=1
      $region17: #{mynet_forward.1} parent=15 // loop_pre_header
        _
      $region18: #{mynet_forward.1} parent=15 // loop_header
        %s23 = sphi 0, %s27
        %p24 = scmp.ge.s32.totalorder %s23, 1
        %s28 = sphi %s14, %s14
        %s29 = sphi %s15, %s15
      $region19: #{mynet_forward.1} parent=15 // loop_header_branch
        %26 = sbr.rel (%p24) target = $region23
      $region20: #{mynet_forward.1} parent=15 // loop_body
        %v30 = vld [vmem:[%s28] sm:%s21]
        %31 = vst [vmem:[%s29] sm:%s21] %v30
      $region21: #{mynet_forward.1} parent=15 // loop_footer
        %s27 = sadd.s32 1, %s23
      $region22: #{mynet_forward.1} parent=15 // loop_footer_branch
        %22 = sbr.rel target = $region18
      $region23: #{mynet_forward.1} parent=15 // loop_exit
        _
    $region16: #{mynet_forward.1} parent=5 // pred_fallthru
      _
    // Predicated region
    $region39: #{mynet_forward.1} parent=5 // pred_check
      _
    $region40: #{mynet_forward.1} parent=5 // pred_check_branch
      %48 = sbr.rel (0) target = $region42
    $region41: #{mynet_forward.1} parent=5 // pred_region
      %49 = vsyncadd [#allocation2], 128
    $region42: #{mynet_forward.1} parent=5 // pred_fallthru
      _
    %s50 = smul.u32 8, 1
    %s51 = sshll.u32 %s50, 4
    %52 = dma.done [#allocation2], %s51
  $region6: #{mynet_forward.1} parent=0 // loop_footer
    %s11 = sadd.s32 1, %s7
  $region7: #{mynet_forward.1} parent=0 // loop_footer_branch
    %6 = sbr.rel target = $region3
  $region8: #{mynet_forward.1} parent=0 // loop_exit
    _
  %53 = vsyncmov [#allocation2]
  %s54 = vpop.sfrf %53
  %p55 = scmp.eq.s32.totalorder %s54, 0
  %p56 = pneg %p55
  %58 = shalt.err (%p56)

</llo_original>
